<compile_context>
chip_gen: v7x
topology: tpu7x:2x2x1
jax: 0.10.0
libtpu: 0.0.40
codegen_flags: <defaults>
</compile_context>

<pallas_src>
import jax
import jax.numpy as jnp
from jax import lax
from jax.experimental import pallas as pl
from jax.experimental.pallas import tpu as pltpu

BN_EPS = 1e-5


def _make_mid_layer_kernel(m_real: int):
    """Fused (im2col-matmul) Conv1d + BatchNorm1d(train) + ReLU kernel body."""
    inv_m = 1.0 / float(m_real)

    def kernel(x_ref, w_ref, gamma_ref, beta_ref, o_ref):
        # x_ref:     (M_pad, K*Cin)  bf16  im2col LHS (padded rows are zero)
        # w_ref:     (K*Cin, Cout)   bf16  tap-major flattened conv weight
        # gamma_ref: (1, Cout)       f32
        # beta_ref:  (1, Cout)       f32
        # o_ref:     (M_pad, Cout)   f32
        acc = jnp.dot(x_ref[...], w_ref[...],
                      preferred_element_type=jnp.float32)     # one MXU pass

        # BatchNorm1d training-mode statistics over the (N, L_out) rows.
        # Single pass over acc: sum and sum-of-squares.  Padded rows are
        # exactly zero, so they contribute nothing; divide by the real count.
        s1 = jnp.sum(acc, axis=0, keepdims=True)              # (1, Cout)
        s2 = jnp.sum(acc * acc, axis=0, keepdims=True)
        mu = s1 * inv_m
        var = jnp.maximum(s2 * inv_m - mu * mu, 0.0)          # biased variance
        scale = gamma_ref[...] * lax.rsqrt(var + BN_EPS)      # rsqrt -> EUP
        o_ref[...] = jnp.maximum((acc - mu) * scale + beta_ref[...], 0.0)
        # Conv bias shifts mu by the same per-channel constant and cancels
        # exactly in (acc + b) - mean(acc + b); it is intentionally not loaded.
        # TODO(synk): BatchNorm running-stat buffer updates (running_mean/var,
        # num_batches_tracked) are training-side state and are not modeled;
        # they do not affect the forward output.

    return kernel


def mid_layer_forward(x_ncl, w_oik, b, gamma, beta, *, stride=1, padding=1):
    """MidLayer forward.

    x_ncl: (N, Cin, L) PyTorch layout.  w_oik: (Cout, Cin, K) PyTorch Conv1d
    weight.  Returns (N, Cout, L_out) f32 (PyTorch NCL layout).
    """
    del b  # conv bias cancels under training-mode BatchNorm (see kernel note)
    n, cin, l_in = x_ncl.shape
    cout, _, k_size = w_oik.shape
    l_out = (l_in + 2 * padding - k_size) // stride + 1
    m_real = n * l_out
    m_pad = ((m_real + 15) // 16) * 16          # bf16 packs 16 rows per vreg

    # Channels-last + im2col in the wrapper: the kernel sees one contiguous
    # (M, K*Cin) LHS -> a single full-depth MXU matmul, no per-tap misaligned
    # slices, and any stride is resolved once by an XLA strided slice on HBM.
    x = jnp.transpose(x_ncl, (0, 2, 1))                           # (N, L, Cin)
    xp = jnp.pad(x, ((0, 0), (padding, padding), (0, 0)))         # (N, L+2p, Cin)
    span = (l_out - 1) * stride + 1
    cols = jnp.concatenate(
        [xp[:, k:k + span:stride, :] for k in range(k_size)], axis=-1)
    lhs = cols.reshape(m_real, k_size * cin)
    lhs = jnp.pad(lhs, ((0, m_pad - m_real), (0, 0))).astype(jnp.bfloat16)

    w = jnp.transpose(w_oik, (2, 1, 0)).reshape(k_size * cin, cout)
    w = w.astype(jnp.bfloat16)                                    # (K*Cin, Cout)
    gamma2 = gamma.reshape(1, cout).astype(jnp.float32)
    beta2 = beta.reshape(1, cout).astype(jnp.float32)

    kc = k_size * cin
    flops = 2 * m_pad * kc * cout + 8 * m_pad * cout
    bytes_accessed = (2 * lhs.size + 2 * w.size
                      + 4 * (gamma2.size + beta2.size) + 4 * m_pad * cout)

    out = pl.pallas_call(
        _make_mid_layer_kernel(m_real),
        grid=(1,),
        out_shape=jax.ShapeDtypeStruct((m_pad, cout), jnp.float32),
        in_specs=[
            pl.BlockSpec((m_pad, kc), lambda i: (0, 0)),
            pl.BlockSpec((kc, cout), lambda i: (0, 0)),
            pl.BlockSpec((1, cout), lambda i: (0, 0)),
            pl.BlockSpec((1, cout), lambda i: (0, 0)),
        ],
        out_specs=pl.BlockSpec((m_pad, cout), lambda i: (0, 0)),
        compiler_params=pltpu.CompilerParams(
            dimension_semantics=("arbitrary",)),
        cost_estimate=pl.CostEstimate(
            flops=flops, transcendentals=cout, bytes_accessed=bytes_accessed),
    )(lhs, w, gamma2, beta2)

    y = out[:m_real].reshape(n, l_out, cout)
    return jnp.transpose(y, (0, 2, 1))                            # -> (N, Cout, L_out)


# ---------------- pure-JAX reference (PyTorch semantics, same numerics) ------
def _ref_mid_layer(x_ncl, w, b, gamma, beta, *, stride=1, padding=1):
    n, cin, l_in = x_ncl.shape
    cout, _, k_size = w.shape
    l_out = (l_in + 2 * padding - k_size) // stride + 1
    x = jnp.transpose(x_ncl, (0, 2, 1))
    xp = jnp.pad(x, ((0, 0), (padding, padding), (0, 0))).astype(jnp.bfloat16)
    wt = jnp.transpose(w, (2, 1, 0)).astype(jnp.bfloat16)
    y = sum(
        jnp.einsum(
            'nlc,cd->nld',
            lax.slice_in_dim(xp, k, k + (l_out - 1) * stride + 1, stride, axis=1),
            wt[k], preferred_element_type=jnp.float32)
        for k in range(k_size)) + b
    mu = y.mean(axis=(0, 1), keepdims=True)
    var = ((y - mu) ** 2).mean(axis=(0, 1), keepdims=True)
    y = (y - mu) / jnp.sqrt(var + BN_EPS) * gamma + beta
    return jnp.transpose(jnp.maximum(y, 0.0), (0, 2, 1))


if __name__ == "__main__":
    key = jax.random.PRNGKey(0)
    batch, cin, cout, seq = 2, 64, 128, 16
    k_size, stride, padding = 3, 1, 1

    key, k1, k2, k3, k4, kx = jax.random.split(key, 6)
    w = 0.1 * jax.random.normal(k1, (cout, cin, k_size), jnp.float32)
    b = 0.1 * jax.random.normal(k2, (cout,), jnp.float32)
    gamma = 1.0 + 0.1 * jax.random.normal(k3, (cout,), jnp.float32)
    beta = 0.1 * jax.random.normal(k4, (cout,), jnp.float32)
    x = jax.random.normal(kx, (batch, cin, seq), jnp.float32)        # NCL layout

    y = mid_layer_forward(x, w, b, gamma, beta, stride=stride, padding=padding)
    y = jax.block_until_ready(y)
    assert y.shape == (batch, cout, seq), y.shape

    y_ref = _ref_mid_layer(x, w, b, gamma, beta, stride=stride, padding=padding)
    max_err = float(jnp.abs(y - y_ref).max())
    assert jnp.allclose(y, y_ref, atol=1e-2, rtol=1e-2), max_err

    print("KERNEL_OK")
</pallas_src>

<mosaic_0001>
module attributes {stable_mosaic.version = 11 : i64} {
  func.func @kernel(%arg0: i32, %arg1: memref<32x192xbf16, #tpu.memory_space<vmem>>, %arg2: memref<192x128xbf16, #tpu.memory_space<vmem>>, %arg3: memref<1x128xf32, #tpu.memory_space<vmem>>, %arg4: memref<1x128xf32, #tpu.memory_space<vmem>>, %arg5: memref<32x128xf32, #tpu.memory_space<vmem>>) attributes {dimension_semantics = [#tpu.dimension_semantics<arbitrary>], iteration_bounds = array<i64: 1>, scalar_prefetch = 0 : i64, scratch_operands = 0 : i64, tpu.core_type = #tpu.core_type<tc>, window_params = [{pipeline_mode = #tpu.pipeline_mode<synchronous>, transform_indices = @transform_0, window_bounds = array<i64: 32, 192>}, {pipeline_mode = #tpu.pipeline_mode<synchronous>, transform_indices = @transform_1, window_bounds = array<i64: 192, 128>}, {pipeline_mode = #tpu.pipeline_mode<synchronous>, transform_indices = @transform_2, window_bounds = array<i64: 1, 128>}, {pipeline_mode = #tpu.pipeline_mode<synchronous>, transform_indices = @transform_3, window_bounds = array<i64: 1, 128>}, {pipeline_mode = #tpu.pipeline_mode<synchronous>, transform_indices = @transform_4, window_bounds = array<i64: 32, 128>}]} {
    %c0 = arith.constant 0 : index
    %c0_0 = arith.constant 0 : index
    %0 = vector.load %arg1[%c0, %c0_0] : memref<32x192xbf16, #tpu.memory_space<vmem>>, vector<32x192xbf16>
    %c0_1 = arith.constant 0 : index
    %c0_2 = arith.constant 0 : index
    %1 = vector.load %arg2[%c0_1, %c0_2] : memref<192x128xbf16, #tpu.memory_space<vmem>>, vector<192x128xbf16>
    %cst = arith.constant dense<0.000000e+00> : vector<32x128xf32>
    %2 = tpu.matmul %0, %1, %cst {dimension_numbers = #tpu.dot_dimension_numbers<[1], [0], [0], [1], [0, 0, 1, 1], [], []>} : vector<32x192xbf16>, vector<192x128xbf16>, vector<32x128xf32> -> vector<32x128xf32>
    %cst_3 = arith.constant dense<0.000000e+00> : vector<128xf32>
    %3 = vector.multi_reduction <add>, %2, %cst_3 [0] : vector<32x128xf32> to vector<128xf32>
    %4 = vector.shape_cast %3 : vector<128xf32> to vector<1x128xf32>
    %5 = arith.mulf %2, %2 : vector<32x128xf32>
    %cst_4 = arith.constant dense<0.000000e+00> : vector<128xf32>
    %6 = vector.multi_reduction <add>, %5, %cst_4 [0] : vector<32x128xf32> to vector<128xf32>
    %7 = vector.shape_cast %6 : vector<128xf32> to vector<1x128xf32>
    %cst_5 = arith.constant 3.125000e-02 : f32
    %8 = vector.broadcast %cst_5 : f32 to vector<1x128xf32>
    %9 = arith.mulf %4, %8 : vector<1x128xf32>
    %cst_6 = arith.constant 3.125000e-02 : f32
    %10 = vector.broadcast %cst_6 : f32 to vector<1x128xf32>
    %11 = arith.mulf %7, %10 : vector<1x128xf32>
    %12 = arith.mulf %9, %9 : vector<1x128xf32>
    %13 = arith.subf %11, %12 : vector<1x128xf32>
    %cst_7 = arith.constant 0.000000e+00 : f32
    %14 = vector.broadcast %cst_7 : f32 to vector<1x128xf32>
    %15 = arith.maximumf %13, %14 : vector<1x128xf32>
    %c0_8 = arith.constant 0 : index
    %c0_9 = arith.constant 0 : index
    %16 = vector.load %arg3[%c0_8, %c0_9] : memref<1x128xf32, #tpu.memory_space<vmem>>, vector<1x128xf32>
    %cst_10 = arith.constant 9.99999974E-6 : f32
    %17 = vector.broadcast %cst_10 : f32 to vector<1x128xf32>
    %18 = arith.addf %15, %17 : vector<1x128xf32>
    %19 = math.rsqrt %18 : vector<1x128xf32>
    %20 = arith.mulf %16, %19 : vector<1x128xf32>
    %21 = vector.broadcast %9 : vector<1x128xf32> to vector<32x128xf32>
    %22 = arith.subf %2, %21 : vector<32x128xf32>
    %23 = vector.broadcast %20 : vector<1x128xf32> to vector<32x128xf32>
    %24 = arith.mulf %22, %23 : vector<32x128xf32>
    %c0_11 = arith.constant 0 : index
    %c0_12 = arith.constant 0 : index
    %25 = vector.load %arg4[%c0_11, %c0_12] : memref<1x128xf32, #tpu.memory_space<vmem>>, vector<1x128xf32>
    %26 = vector.broadcast %25 : vector<1x128xf32> to vector<32x128xf32>
    %27 = arith.addf %24, %26 : vector<32x128xf32>
    %cst_13 = arith.constant 0.000000e+00 : f32
    %28 = vector.broadcast %cst_13 : f32 to vector<32x128xf32>
    %29 = arith.maximumf %27, %28 : vector<32x128xf32>
    %c0_14 = arith.constant 0 : index
    %c0_15 = arith.constant 0 : index
    %30 = vector.load %arg5[%c0_14, %c0_15] : memref<32x128xf32, #tpu.memory_space<vmem>>, vector<32x128xf32>
    tpu.vector_store %arg5[%c0_14, %c0_15], %29 {strides = array<i32>} : memref<32x128xf32, #tpu.memory_space<vmem>>, vector<32x128xf32>,
    return
  }
  func.func @transform_0(%arg0: i32) -> (i32, i32) {
    %c0_i32 = arith.constant 0 : i32
    %c0_i32_0 = arith.constant 0 : i32
    %c0_i32_1 = arith.constant 0 : i32
    return %c0_i32, %c0_i32_0 : i32, i32
  }
  func.func @transform_1(%arg0: i32) -> (i32, i32) {
    %c0_i32 = arith.constant 0 : i32
    %c0_i32_0 = arith.constant 0 : i32
    %c0_i32_1 = arith.constant 0 : i32
    return %c0_i32, %c0_i32_0 : i32, i32
  }
  func.func @transform_2(%arg0: i32) -> (i32, i32) {
    %c0_i32 = arith.constant 0 : i32
    %c0_i32_0 = arith.constant 0 : i32
    %c0_i32_1 = arith.constant 0 : i32
    return %c0_i32, %c0_i32_0 : i32, i32
  }
  func.func @transform_3(%arg0: i32) -> (i32, i32) {
    %c0_i32 = arith.constant 0 : i32
    %c0_i32_0 = arith.constant 0 : i32
    %c0_i32_1 = arith.constant 0 : i32
    return %c0_i32, %c0_i32_0 : i32, i32
  }
  func.func @transform_4(%arg0: i32) -> (i32, i32) {
    %c0_i32 = arith.constant 0 : i32
    %c0_i32_0 = arith.constant 0 : i32
    %c0_i32_1 = arith.constant 0 : i32
    return %c0_i32, %c0_i32_0 : i32, i32
  }
}

</mosaic_0001>

<llo_original>
// kernel: tpu_custom_call.1
$region0: #{tpu_custom_call.1}
  #allocation0 [shape = 'u32[]', space=smem, size = 0x4, offset = 0x4, fixed_abs, tag = 'smem constant byte address 0x4 - core index']
  #allocation1 [shape = 'u32[144,128]{1,0:T(1,128)}', space=vmem, size = 0x12000, scoped, tag = 'internal scratch']
  %s0 = inlined_call_operand.hbm [shape: bf16[32,192], index: 0, kind: input, shape index: {}]
  %s1 = inlined_call_operand.hbm [shape: bf16[192,128], index: 1, kind: input, shape index: {}]
  %s2 = inlined_call_operand.vmem [shape: f32[1,128], index: 2, kind: input, shape index: {}]
  %s3 = inlined_call_operand.vmem [shape: f32[1,128], index: 3, kind: input, shape index: {}]
  %s4 = inlined_call_operand.hbm [shape: f32[32,128], index: 4, kind: output, shape index: {}]
  %s5 = sld [smem:[#allocation0]]
  $region34: #{tpu_custom_call.1} parent=0
    _
  %s7 = ssub.s32 1, %s5
  %s8 = scalar_select 0, %s7, %s5
  $region1: #{tpu_custom_call.1} parent=0
    #allocation2 [shape = 'u8[16384]{0}', space=vmem, size = 0x4000, scoped, tag = 'input window, operand 0, single buffered']
    #allocation3 [shape = 's32[1]{0}', space=sflag, size = 0x4, scoped, tag = 'scoped memory for tpu_custom_call.1']
    #allocation4 [shape = 's32[1]{0}', space=sflag, size = 0x4, scoped, tag = 'scoped memory for tpu_custom_call.1']
    #allocation5 [shape = 'u8[49152]{0}', space=vmem, size = 0xc000, scoped, tag = 'input window, operand 1, single buffered']
    #allocation6 [shape = 's32[1]{0}', space=sflag, size = 0x4, scoped, tag = 'scoped memory for tpu_custom_call.1']
    #allocation7 [shape = 'u8[16384]{0}', space=vmem, size = 0x4000, scoped, tag = 'output window, operand 0, single buffered']
    %9 = vsyncpa [#allocation3], 0
    %10 = vsyncpa [#allocation6], 0
    %11 = vsyncpa [#allocation4], 0
    // Predicated region
    $region2: #{tpu_custom_call.1} parent=1 // pred_check
      _
    $region3: #{tpu_custom_call.1} parent=1 // pred_check_branch
      %13 = sbr.rel (0) target = $region5
    $region4: #{tpu_custom_call.1} parent=1 // pred_region
      %s15 = ssub.s32 512, 512
      %16 = vsyncadd [#allocation3], %s15
      %s17 = sshll.u32 [#allocation2], 4
      %s18 = int_to_ptr.vmem [resolvable:$true] %s17
      %23 = dma.hbm_to_vmem [thread:$0]  %s0, 512, %s18, [#allocation3], 128, 128, 8
    $region5: #{tpu_custom_call.1} parent=1 // pred_fallthru
      _
    // Predicated region
    $region6: #{tpu_custom_call.1} parent=1 // pred_check
      _
    $region7: #{tpu_custom_call.1} parent=1 // pred_check_branch
      %25 = sbr.rel (0) target = $region9
    $region8: #{tpu_custom_call.1} parent=1 // pred_region
      %s27 = ssub.s32 1536, 1536
      %28 = vsyncadd [#allocation6], %s27
      %s29 = sshll.u32 [#allocation5], 4
      %s30 = int_to_ptr.vmem [resolvable:$true] %s29
      %35 = dma.hbm_to_vmem [thread:$0]  %s1, 1536, %s30, [#allocation6], 64, 64, 4
    $region9: #{tpu_custom_call.1} parent=1 // pred_fallthru
      _
    // Predicated region
    $region10: #{tpu_custom_call.1} parent=1 // pred_check
      _
    $region11: #{tpu_custom_call.1} parent=1 // pred_check_branch
      %37 = sbr.rel (0) target = $region13
    $region12: #{tpu_custom_call.1} parent=1 // pred_region
      _
    $region13: #{tpu_custom_call.1} parent=1 // pred_fallthru
      _
    // Predicated region
    $region14: #{tpu_custom_call.1} parent=1 // pred_check
      _
    $region15: #{tpu_custom_call.1} parent=1 // pred_check_branch
      %39 = sbr.rel (0) target = $region17
    $region16: #{tpu_custom_call.1} parent=1 // pred_region
      _
    $region17: #{tpu_custom_call.1} parent=1 // pred_fallthru
      _
    // Predicated region
    $region18: #{tpu_custom_call.1} parent=1 // pred_check
      _
    $region19: #{tpu_custom_call.1} parent=1 // pred_check_branch
      %41 = sbr.rel (0) target = $region21
    $region20: #{tpu_custom_call.1} parent=1 // pred_region
      %42 = dma.done [#allocation3], 512
    $region21: #{tpu_custom_call.1} parent=1 // pred_fallthru
      _
    // Predicated region
    $region22: #{tpu_custom_call.1} parent=1 // pred_check
      _
    $region23: #{tpu_custom_call.1} parent=1 // pred_check_branch
      %44 = sbr.rel (0) target = $region25
    $region24: #{tpu_custom_call.1} parent=1 // pred_region
      %45 = dma.done [#allocation6], 1536
    $region25: #{tpu_custom_call.1} parent=1 // pred_fallthru
      _
    %v47 = vld [vmem:[#allocation2] sm:$0xff]
    %v48 = vld [vmem:[#allocation2 + $0x8] sm:$0xff]
    %v49 = vld [vmem:[#allocation2 + $0x10] sm:$0xff]
    %v50 = vld [vmem:[#allocation2 + $0x18] sm:$0xff]
    %v51 = vld [vmem:[#allocation5] sm:$0xf]
    %v52 = vld [vmem:[#allocation5 + $0x4] sm:$0xf]
    %v53 = vld [vmem:[#allocation5 + $0x8] sm:$0xf]
    %v54 = vld [vmem:[#allocation5 + $0xc] sm:$0xf]
    %v55 = vld [vmem:[#allocation5 + $0x10] sm:$0xf]
    %v56 = vld [vmem:[#allocation5 + $0x14] sm:$0xf]
    %v57 = vld [vmem:[#allocation5 + $0x18] sm:$0xf]
    %v58 = vld [vmem:[#allocation5 + $0x1c] sm:$0xf]
    %v59 = vld [vmem:[#allocation5 + $0x20] sm:$0xf]
    %v60 = vld [vmem:[#allocation5 + $0x24] sm:$0xf]
    %v61 = vld [vmem:[#allocation5 + $0x28] sm:$0xf]
    %v62 = vld [vmem:[#allocation5 + $0x2c] sm:$0xf]
    %v63 = vld [vmem:[#allocation5 + $0x30] sm:$0xf]
    %v64 = vld [vmem:[#allocation5 + $0x34] sm:$0xf]
    %v65 = vld [vmem:[#allocation5 + $0x38] sm:$0xf]
    %v66 = vld [vmem:[#allocation5 + $0x3c] sm:$0xf]
    %v67 = vld [vmem:[#allocation5 + $0x40] sm:$0xf]
    %v68 = vld [vmem:[#allocation5 + $0x44] sm:$0xf]
    %v69 = vld [vmem:[#allocation5 + $0x48] sm:$0xf]
    %v70 = vld [vmem:[#allocation5 + $0x4c] sm:$0xf]
    %v71 = vld [vmem:[#allocation5 + $0x50] sm:$0xf]
    %v72 = vld [vmem:[#allocation5 + $0x54] sm:$0xf]
    %v73 = vld [vmem:[#allocation5 + $0x58] sm:$0xf]
    %v74 = vld [vmem:[#allocation5 + $0x5c] sm:$0xf]
    %v79 = vunpack.c.l.b16 %v47
    %v80 = vunpack.c.h.b16 %v47
    %v81 = vunpack.c.l.b16 %v48
    %v82 = vunpack.c.h.b16 %v48
    %v83 = vunpack.c.l.b16 %v49
    %v84 = vunpack.c.h.b16 %v49
    %v85 = vunpack.c.l.b16 %v50
    %v86 = vunpack.c.h.b16 %v50
    %v87 = vpack.c.b16 %v81, %v79
    %v88 = vpack.c.b16 %v82, %v80
    %v89 = vpack.c.b16 %v85, %v83
    %v90 = vpack.c.b16 %v86, %v84
    %v117 = vunpack.c.l.b16 %v51
    %v118 = vunpack.c.l.b16 %v52
    %v119 = vunpack.c.l.b16 %v53
    %v120 = vunpack.c.l.b16 %v54
    %v121 = vunpack.c.l.b16 %v55
    %v122 = vunpack.c.l.b16 %v56
    %v123 = vunpack.c.l.b16 %v57
    %v124 = vunpack.c.l.b16 %v58
    %v125 = vunpack.c.l.b16 %v59
    %v126 = vunpack.c.l.b16 %v60
    %v127 = vunpack.c.l.b16 %v61
    %v128 = vunpack.c.l.b16 %v62
    %v129 = vunpack.c.l.b16 %v63
    %v130 = vunpack.c.l.b16 %v64
    %v131 = vunpack.c.l.b16 %v65
    %v132 = vunpack.c.l.b16 %v66
    %v133 = vunpack.c.l.b16 %v67
    %v134 = vunpack.c.l.b16 %v68
    %v135 = vunpack.c.l.b16 %v69
    %v136 = vunpack.c.l.b16 %v70
    %v137 = vunpack.c.l.b16 %v71
    %v138 = vunpack.c.l.b16 %v72
    %v139 = vunpack.c.l.b16 %v73
    %v140 = vunpack.c.l.b16 %v74
    %v141 = vpack.c.b16 %v118, %v117
    %v142 = vpack.c.b16 %v120, %v119
    %v143 = vpack.c.b16 %v122, %v121
    %v144 = vpack.c.b16 %v124, %v123
    %v145 = vpack.c.b16 %v126, %v125
    %v146 = vpack.c.b16 %v128, %v127
    %v147 = vpack.c.b16 %v130, %v129
    %v148 = vpack.c.b16 %v132, %v131
    %v149 = vpack.c.b16 %v134, %v133
    %v150 = vpack.c.b16 %v136, %v135
    %v151 = vpack.c.b16 %v138, %v137
    %v152 = vpack.c.b16 %v140, %v139
    %vm165 = vcmask 523264
    %v167 = vsel %vm165, %v88, 0
    %v170 = vsel %vm165, %v90, 0
    %172 = vmatprep.subr.bf16.mxu0 0
    %173 = vmatpush1.bf16.msra.mxu0 %v141
    %174 = vmatprep.subr.bf16.mxu0 0
    %175 = vmatpush1.bf16.msra.mxu0 %v142
    %176 = vmatprep.subr.bf16.mxu0 0
    %177 = vmatpush1.bf16.msra.mxu0 %v143
    %178 = vmatprep.subr.bf16.mxu0 0
    %179 = vmatpush1.bf16.msra.mxu0 %v144
    %180 = vmatprep.subr.bf16.mxu0 0
    %181 = vmatpush1.bf16.msra.mxu0 %v145
    %182 = vmatprep.subr.bf16.mxu0 0
    %183 = vmatpush1.bf16.msra.mxu0 %v146
    %184 = vmatprep.subr.bf16.mxu0 0
    %185 = vmatpush1.bf16.msra.mxu0 %v147
    %186 = vmatprep.subr.bf16.mxu0 0
    %187 = vmatpush1.bf16.msra.mxu0 %v148
    %188 = vmatprep.subr.bf16.mxu0 0
    %189 = vmatpush1.bf16.msra.mxu0 %v149
    %190 = vmatprep.subr.bf16.mxu0 0
    %191 = vmatpush1.bf16.msra.mxu0 %v150
    %192 = vmatprep.subr.bf16.mxu0 0
    %193 = vmatpush1.bf16.msra.mxu0 %v151
    %194 = vmatprep.subr.bf16.mxu0 0
    %195 = vmatpush1.bf16.msra.mxu0 %v152
    %196 = vmatprep.subr.bf16.mxu0 0
    %197 = vmatpush1.bf16.msra.mxu0 0
    %198 = vmatprep.subr.bf16.mxu0 0
    %199 = vmatpush1.bf16.msra.mxu0 0
    %200 = vmatprep.subr.bf16.mxu0 0
    %201 = vmatpush1.bf16.msra.mxu0 0
    %202 = vmatprep.subr.bf16.mxu0 0
    %203 = vmatpush1.bf16.msra.mxu0 0
    %204 = vmatprep.mubr.bf16.mxu0 %v167
    %205 = vmatmul.mubr.bf16.gmra.mrb[0].mxu0 %v87
    %v206 = vpop.f32.mrb[0].mxu0
    %v207 = vadd.f32 0.0, %v206
    %v208 = vpop.f32.mrb[0].mxu0
    %v209 = vpop.f32.mrb[0].mxu0
    %v210 = vadd.f32 0.0, %v209
    %v211 = vpop.f32.mrb[0].mxu0
    %212 = vmatprep.mubr.bf16.mxu0 %v170
    %213 = vmatmul.mubr.bf16.gmra.mrb[0].mxu0 %v89
    %v214 = vpop.f32.mrb[0].mxu0
    %v215 = vadd.f32 0.0, %v214
    %v216 = vpop.f32.mrb[0].mxu0
    %v217 = vpop.f32.mrb[0].mxu0
    %v218 = vadd.f32 0.0, %v217
    %v219 = vpop.f32.mrb[0].mxu0
    %220 = vdwg.mxu0
    %v221 = vadd.f32 %v207, %v210
    %v222 = vadd.f32 %v221, %v215
    %v223 = vadd.f32 %v222, %v218
    %v224 = vrot.slane %v223, 4
    %v225 = vadd.f32 %v223, %v224
    %v226 = vrot.slane %v225, 2
    %v227 = vadd.f32 %v225, %v226
    %v228 = vrot.slane %v227, 1
    %v229 = vadd.f32 %v227, %v228
    %v230 = vmul.f32 %v207, %v207
    %v231 = vmul.f32 %v210, %v210
    %v232 = vmul.f32 %v215, %v215
    %v233 = vmul.f32 %v218, %v218
    %v234 = vadd.f32 %v230, %v231
    %v235 = vadd.f32 %v234, %v232
    %v236 = vadd.f32 %v235, %v233
    %v237 = vrot.slane %v236, 4
    %v238 = vadd.f32 %v236, %v237
    %v239 = vrot.slane %v238, 2
    %v240 = vadd.f32 %v238, %v239
    %v241 = vrot.slane %v240, 1
    %v242 = vadd.f32 %v240, %v241
    %v243 = vmul.f32 %v229, 0.03125
    %v244 = vmul.f32 %v242, 0.03125
    %v245 = vmul.f32 %v243, %v243
    %v246 = vsub.f32 %v244, %v245
    %v247 = vmax.f32 %v246, 0.0
    %v248 = vld [vmem:[%s2] sm:$0x1]
    %v249 = vadd.f32 %v247, 1e-05
    %v250 = vrsqrt.pop %v249
    %v251 = vmul.f32 %v248, %v250
    %v252 = vsub.f32 %v207, %v243
    %v253 = vsub.f32 %v210, %v243
    %v254 = vsub.f32 %v215, %v243
    %v255 = vsub.f32 %v218, %v243
    %v257 = vlaneseq
    %v258 = vshrl.u32 %v257, 7
    %v259 = vsub.s32 0, %v258
    %v260 = vrot.slane %v251, %v259
    %v262 = vmul.f32 %v252, %v260
    %v263 = vmul.f32 %v253, %v260
    %v264 = vmul.f32 %v254, %v260
    %v265 = vmul.f32 %v255, %v260
    %v266 = vld [vmem:[%s3] sm:$0x1]
    %v268 = vlaneseq
    %v269 = vshrl.u32 %v268, 7
    %v270 = vsub.s32 0, %v269
    %v271 = vrot.slane %v266, %v270
    %v273 = vadd.f32 %v262, %v271
    %v274 = vadd.f32 %v263, %v271
    %v275 = vadd.f32 %v264, %v271
    %v276 = vadd.f32 %v265, %v271
    %v277 = vmax.f32 %v273, 0.0
    %v278 = vmax.f32 %v274, 0.0
    %v279 = vmax.f32 %v275, 0.0
    %v280 = vmax.f32 %v276, 0.0
    %281 = vst [vmem:[#allocation7] sm:$0xff] %v277
    %282 = vst [vmem:[#allocation7 + $0x8] sm:$0xff] %v278
    %283 = vst [vmem:[#allocation7 + $0x10] sm:$0xff] %v279
    %284 = vst [vmem:[#allocation7 + $0x18] sm:$0xff] %v280
    // Predicated region
    $region26: #{tpu_custom_call.1} parent=1 // pred_check
      _
    $region27: #{tpu_custom_call.1} parent=1 // pred_check_branch
      %286 = sbr.rel (0) target = $region29
    $region28: #{tpu_custom_call.1} parent=1 // pred_region
      %s288 = ssub.s32 512, 512
      %289 = vsyncadd [#allocation4], %s288
      %s290 = sshll.u32 [#allocation7], 4
      %s291 = int_to_ptr.vmem [resolvable:$true] %s290
      %296 = dma.vmem_to_hbm [thread:$0]  %s291, 512, %s4, [#allocation4], 128, 128, 8
    $region29: #{tpu_custom_call.1} parent=1 // pred_fallthru
      _
    // Predicated region
    $region30: #{tpu_custom_call.1} parent=1 // pred_check
      _
    $region31: #{tpu_custom_call.1} parent=1 // pred_check_branch
      %298 = sbr.rel (0) target = $region33
    $region32: #{tpu_custom_call.1} parent=1 // pred_region
      %299 = dma.done [#allocation4], 512
    $region33: #{tpu_custom_call.1} parent=1 // pred_fallthru
      _
    %300 = vsyncpa [#allocation3], 1
    %301 = vsyncpa [#allocation6], 1
    %302 = vsyncpa [#allocation4], 1

</llo_original>
